<compile_context>
chip_gen: v6e
topology: v6e:2x2x1
jax: 0.10.0
libtpu: 0.0.40
codegen_flags: <defaults>
</compile_context>

<pallas_src>
import numpy as np
import jax
import jax.numpy as jnp
from jax import lax
from jax.experimental import pallas as pl
from jax.experimental.pallas import tpu as pltpu


# ----------------------------------------------------------------------------
# Pallas kernel
# ----------------------------------------------------------------------------
def hierarchical_foul_loss_kernel(bp_ref, ub_ref, lb_ref, sev_ref,
                                  bpt_ref, at_ref, st_ref,
                                  wbp_ref, wu_ref, wl_ref, ws_ref, out_ref):
    f32 = jnp.float32

    def masked_weighted_ce(logits, tgt, w_row, mask_f):
        """PyTorch CrossEntropyLoss semantics on a masked subset.

        logits: (B, C) f32, tgt: (B, 1) i32, w_row: (1, C) f32,
        mask_f: (B, 1) f32 in {0, 1}.  Returns (1, 1) f32;
        0.0 if the mask selects no rows (matches the host-side `if`).
        """
        cls = lax.broadcasted_iota(jnp.int32, logits.shape, 1)       # (B, C)
        onehot = (cls == tgt).astype(f32)                            # (B, C)
        picked = jnp.sum(logits * onehot, axis=1, keepdims=True)     # (B, 1)
        m = jnp.max(logits, axis=1, keepdims=True)
        lse = m + jnp.log(jnp.sum(jnp.exp(logits - m), axis=1, keepdims=True))
        nll = lse - picked                                           # (B, 1)
        w = jnp.sum(w_row * onehot, axis=1, keepdims=True)           # (B, 1)
        num = jnp.sum(mask_f * w * nll, axis=0, keepdims=True)       # (1, 1)
        den = jnp.sum(mask_f * w, axis=0, keepdims=True)             # (1, 1)
        cnt = jnp.sum(mask_f, axis=0, keepdims=True)                 # (1, 1)
        den_safe = jnp.where(cnt > 0.0, den, 1.0)
        return jnp.where(cnt > 0.0, num / den_safe, 0.0)

    bp_t = bpt_ref[...]                                              # (B, 1) i32
    a_t = at_ref[...]                                                # (B, 1) i32
    s_t = st_ref[...]                                                # (B, 1) i32

    full_mask = jnp.ones_like(bp_t, dtype=f32)                       # (B, 1)
    upper_mask = (bp_t == 0).astype(f32)
    lower_mask = (bp_t == 1).astype(f32)
    upper_tgt = jnp.clip(a_t, 0, 4)                                  # clamp(a, 0, 4)
    lower_tgt = jnp.clip(a_t - 5, 0, 4)                              # clamp(a-5, 0, 4)

    # body part head: unweighted mean CE == weighted CE with w = 1.
    bp_loss = masked_weighted_ce(bp_ref[...].astype(f32), bp_t,
                                 wbp_ref[...], full_mask)
    # upper / lower body heads: class-weighted CE over the masked subset.
    ub_loss = masked_weighted_ce(ub_ref[...].astype(f32), upper_tgt,
                                 wu_ref[...], upper_mask)
    lb_loss = masked_weighted_ce(lb_ref[...].astype(f32), lower_tgt,
                                 wl_ref[...], lower_mask)
    # severity head: class-weighted CE over the whole batch.
    sev_loss = masked_weighted_ce(sev_ref[...].astype(f32), s_t,
                                  ws_ref[...], full_mask)

    out_ref[...] = bp_loss + 0.5 * (ub_loss + lb_loss) + sev_loss


# ----------------------------------------------------------------------------
# Wrapper
# ----------------------------------------------------------------------------
def hierarchical_foul_loss(outputs, targets,
                           action_weights=None, severity_weights=None):
    bp = jnp.asarray(outputs['body_part'], jnp.float32)
    ub = jnp.asarray(outputs['upper_body'], jnp.float32)
    lb = jnp.asarray(outputs['lower_body'], jnp.float32)
    sev = jnp.asarray(outputs['severity'], jnp.float32)
    B = bp.shape[0]
    n_bp = bp.shape[1]
    n_sev = sev.shape[1]

    # CrossEntropyLoss(weight=None) == weight of ones (mean reduction).
    wbp = jnp.ones((1, n_bp), jnp.float32)
    if action_weights is None:
        wu = jnp.ones((1, 5), jnp.float32)
        wl = jnp.ones((1, 5), jnp.float32)
    else:
        aw = jnp.asarray(action_weights, jnp.float32)
        wu = aw[:5].reshape(1, 5)
        wl = aw[5:10].reshape(1, 5)
    if severity_weights is None:
        ws = jnp.ones((1, n_sev), jnp.float32)
    else:
        ws = jnp.asarray(severity_weights, jnp.float32).reshape(1, n_sev)

    bpt = jnp.asarray(targets['body_part_label']).reshape(B, 1).astype(jnp.int32)
    at = jnp.asarray(targets['action_label']).reshape(B, 1).astype(jnp.int32)
    st = jnp.asarray(targets['severity_label']).reshape(B, 1).astype(jnp.int32)

    vmem = pl.BlockSpec(memory_space=pltpu.MemorySpace.VMEM)

    @jax.jit
    def run(bp, ub, lb, sev, bpt, at, st, wbp, wu, wl, ws):
        out = pl.pallas_call(
            hierarchical_foul_loss_kernel,
            out_shape=jax.ShapeDtypeStruct((1, 1), jnp.float32),
            in_specs=[vmem] * 11,
            out_specs=vmem,
        )(bp, ub, lb, sev, bpt, at, st, wbp, wu, wl, ws)
        return out[0, 0]

    return run(bp, ub, lb, sev, bpt, at, st, wbp, wu, wl, ws)


# ----------------------------------------------------------------------------
# Pure-numpy reference matching the PyTorch forward
# ----------------------------------------------------------------------------
def _log_softmax_np(x):
    m = x.max(axis=-1, keepdims=True)
    e = np.exp(x - m)
    return x - m - np.log(e.sum(axis=-1, keepdims=True))


def _ce_np(logits, tgt, weight=None):
    logp = _log_softmax_np(logits)
    nll = -logp[np.arange(logits.shape[0]), tgt]
    if weight is None:
        return float(nll.mean())
    w = weight[tgt]
    return float((w * nll).sum() / w.sum())


def reference_np(outputs, targets, action_weights, severity_weights):
    bp = np.asarray(outputs['body_part'], np.float64)
    ub = np.asarray(outputs['upper_body'], np.float64)
    lb = np.asarray(outputs['lower_body'], np.float64)
    sv = np.asarray(outputs['severity'], np.float64)
    bpt = np.asarray(targets['body_part_label'])
    at = np.asarray(targets['action_label'])
    st = np.asarray(targets['severity_label'])
    aw = np.asarray(action_weights, np.float64)
    sw = np.asarray(severity_weights, np.float64)

    upper = bpt == 0
    lower = bpt == 1
    bp_loss = _ce_np(bp, bpt)
    ub_loss = 0.0
    if upper.sum() > 0:
        ub_loss = _ce_np(ub[upper], np.clip(at[upper], 0, 4), aw[:5])
    lb_loss = 0.0
    if lower.sum() > 0:
        lb_loss = _ce_np(lb[lower], np.clip(at[lower] - 5, 0, 4), aw[5:])
    sev_loss = _ce_np(sv, st, sw)
    return bp_loss + 0.5 * (ub_loss + lb_loss) + sev_loss


# ----------------------------------------------------------------------------
if __name__ == "__main__":
    key = jax.random.PRNGKey(0)
    B, N_ACT, N_SEV = 8, 10, 4
    ks = jax.random.split(key, 8)

    outputs = {
        'body_part': jax.random.normal(ks[0], (B, 2), jnp.float32),
        'upper_body': jax.random.normal(ks[1], (B, 5), jnp.float32),
        'lower_body': jax.random.normal(ks[2], (B, 5), jnp.float32),
        'severity': jax.random.normal(ks[3], (B, N_SEV), jnp.float32),
    }
    targets = {
        # deterministic mix so both upper- and lower-body branches are active
        'body_part_label': jnp.array([0, 1, 0, 1, 0, 0, 1, 1], jnp.int32),
        'action_label': jax.random.randint(ks[4], (B,), 0, N_ACT, jnp.int32),
        'severity_label': jax.random.randint(ks[5], (B,), 0, N_SEV, jnp.int32),
    }
    action_weights = jax.random.uniform(ks[6], (N_ACT,), jnp.float32, 0.5, 1.5)
    severity_weights = jax.random.uniform(ks[7], (N_SEV,), jnp.float32, 0.5, 1.5)

    loss = hierarchical_foul_loss(outputs, targets,
                                  action_weights, severity_weights)
    jax.block_until_ready(loss)

    ref = reference_np(outputs, targets, action_weights, severity_weights)
    err = abs(float(loss) - float(ref))
    assert err < 1e-4, f"abs err {err}: got {float(loss)}, want {float(ref)}"
    print("KERNEL_OK")
</pallas_src>

<mosaic_0001>
module attributes {stable_mosaic.version = 11 : i64} {
  func.func @hierarchical_foul_loss_kernel(%arg0: memref<8x2xf32, #tpu.memory_space<vmem>>, %arg1: memref<8x5xf32, #tpu.memory_space<vmem>>, %arg2: memref<8x5xf32, #tpu.memory_space<vmem>>, %arg3: memref<8x4xf32, #tpu.memory_space<vmem>>, %arg4: memref<8x1xi32, #tpu.memory_space<vmem>>, %arg5: memref<8x1xi32, #tpu.memory_space<vmem>>, %arg6: memref<8x1xi32, #tpu.memory_space<vmem>>, %arg7: memref<1x2xf32, #tpu.memory_space<vmem>>, %arg8: memref<1x5xf32, #tpu.memory_space<vmem>>, %arg9: memref<1x5xf32, #tpu.memory_space<vmem>>, %arg10: memref<1x4xf32, #tpu.memory_space<vmem>>, %arg11: memref<1x1xf32, #tpu.memory_space<vmem>>) attributes {dimension_semantics = [], scalar_prefetch = 0 : i64, scratch_operands = 0 : i64, tpu.core_type = #tpu.core_type<tc>} {
    %c0 = arith.constant 0 : index
    %c0_0 = arith.constant 0 : index
    %0 = vector.load %arg4[%c0, %c0_0] : memref<8x1xi32, #tpu.memory_space<vmem>>, vector<8x1xi32>
    %c0_1 = arith.constant 0 : index
    %c0_2 = arith.constant 0 : index
    %1 = vector.load %arg5[%c0_1, %c0_2] : memref<8x1xi32, #tpu.memory_space<vmem>>, vector<8x1xi32>
    %c0_3 = arith.constant 0 : index
    %c0_4 = arith.constant 0 : index
    %2 = vector.load %arg6[%c0_3, %c0_4] : memref<8x1xi32, #tpu.memory_space<vmem>>, vector<8x1xi32>
    %cst = arith.constant 1.000000e+00 : f32
    %3 = vector.broadcast %cst : f32 to vector<8x1xf32>
    %c0_i32 = arith.constant 0 : i32
    %4 = vector.broadcast %c0_i32 : i32 to vector<8x1xi32>
    %5 = arith.cmpi eq, %0, %4 : vector<8x1xi32>
    %6 = arith.extui %5 : vector<8x1xi1> to vector<8x1xi32>
    %7 = arith.sitofp %6 : vector<8x1xi32> to vector<8x1xf32>
    %c1_i32 = arith.constant 1 : i32
    %8 = vector.broadcast %c1_i32 : i32 to vector<8x1xi32>
    %9 = arith.cmpi eq, %0, %8 : vector<8x1xi32>
    %10 = arith.extui %9 : vector<8x1xi1> to vector<8x1xi32>
    %11 = arith.sitofp %10 : vector<8x1xi32> to vector<8x1xf32>
    %c0_i32_5 = arith.constant 0 : i32
    %c4_i32 = arith.constant 4 : i32
    %12 = vector.broadcast %c0_i32_5 : i32 to vector<8x1xi32>
    %13 = arith.maxsi %12, %1 : vector<8x1xi32>
    %14 = vector.broadcast %c4_i32 : i32 to vector<8x1xi32>
    %15 = arith.minsi %14, %13 : vector<8x1xi32>
    %c5_i32 = arith.constant 5 : i32
    %16 = vector.broadcast %c5_i32 : i32 to vector<8x1xi32>
    %17 = arith.subi %1, %16 : vector<8x1xi32>
    %c0_i32_6 = arith.constant 0 : i32
    %c4_i32_7 = arith.constant 4 : i32
    %18 = vector.broadcast %c0_i32_6 : i32 to vector<8x1xi32>
    %19 = arith.maxsi %18, %17 : vector<8x1xi32>
    %20 = vector.broadcast %c4_i32_7 : i32 to vector<8x1xi32>
    %21 = arith.minsi %20, %19 : vector<8x1xi32>
    %c0_8 = arith.constant 0 : index
    %c0_9 = arith.constant 0 : index
    %22 = vector.load %arg0[%c0_8, %c0_9] : memref<8x2xf32, #tpu.memory_space<vmem>>, vector<8x2xf32>
    %c0_10 = arith.constant 0 : index
    %c0_11 = arith.constant 0 : index
    %23 = vector.load %arg7[%c0_10, %c0_11] : memref<1x2xf32, #tpu.memory_space<vmem>>, vector<1x2xf32>
    %24 = tpu.iota {dimensions = array<i32: 1>} : vector<8x2xi32>
    %25 = vector.broadcast %0 : vector<8x1xi32> to vector<8x2xi32>
    %26 = arith.cmpi eq, %24, %25 : vector<8x2xi32>
    %27 = arith.extui %26 : vector<8x2xi1> to vector<8x2xi32>
    %28 = arith.sitofp %27 : vector<8x2xi32> to vector<8x2xf32>
    %29 = arith.mulf %22, %28 : vector<8x2xf32>
    %cst_12 = arith.constant dense<0.000000e+00> : vector<8xf32>
    %30 = vector.multi_reduction <add>, %29, %cst_12 [1] : vector<8x2xf32> to vector<8xf32>
    %31 = vector.shape_cast %30 : vector<8xf32> to vector<8x1xf32>
    %cst_13 = arith.constant dense<0xFF800000> : vector<8xf32>
    %32 = vector.multi_reduction <maximumf>, %22, %cst_13 [1] : vector<8x2xf32> to vector<8xf32>
    %33 = vector.shape_cast %32 : vector<8xf32> to vector<8x1xf32>
    %34 = vector.broadcast %33 : vector<8x1xf32> to vector<8x2xf32>
    %35 = arith.subf %22, %34 : vector<8x2xf32>
    %36 = math.exp %35 : vector<8x2xf32>
    %cst_14 = arith.constant dense<0.000000e+00> : vector<8xf32>
    %37 = vector.multi_reduction <add>, %36, %cst_14 [1] : vector<8x2xf32> to vector<8xf32>
    %38 = vector.shape_cast %37 : vector<8xf32> to vector<8x1xf32>
    %39 = math.log %38 : vector<8x1xf32>
    %40 = arith.addf %33, %39 : vector<8x1xf32>
    %41 = arith.subf %40, %31 : vector<8x1xf32>
    %42 = vector.broadcast %23 : vector<1x2xf32> to vector<8x2xf32>
    %43 = arith.mulf %42, %28 : vector<8x2xf32>
    %cst_15 = arith.constant dense<0.000000e+00> : vector<8xf32>
    %44 = vector.multi_reduction <add>, %43, %cst_15 [1] : vector<8x2xf32> to vector<8xf32>
    %45 = vector.shape_cast %44 : vector<8xf32> to vector<8x1xf32>
    %46 = arith.mulf %3, %45 : vector<8x1xf32>
    %47 = arith.mulf %46, %41 : vector<8x1xf32>
    %cst_16 = arith.constant dense<0.000000e+00> : vector<1xf32>
    %48 = vector.multi_reduction <add>, %47, %cst_16 [0] : vector<8x1xf32> to vector<1xf32>
    %49 = vector.shape_cast %48 : vector<1xf32> to vector<1x1xf32>
    %50 = arith.mulf %3, %45 : vector<8x1xf32>
    %cst_17 = arith.constant dense<0.000000e+00> : vector<1xf32>
    %51 = vector.multi_reduction <add>, %50, %cst_17 [0] : vector<8x1xf32> to vector<1xf32>
    %52 = vector.shape_cast %51 : vector<1xf32> to vector<1x1xf32>
    %cst_18 = arith.constant dense<0.000000e+00> : vector<1xf32>
    %53 = vector.multi_reduction <add>, %3, %cst_18 [0] : vector<8x1xf32> to vector<1xf32>
    %54 = vector.shape_cast %53 : vector<1xf32> to vector<1x1xf32>
    %cst_19 = arith.constant 0.000000e+00 : f32
    %55 = vector.broadcast %cst_19 : f32 to vector<1x1xf32>
    %56 = arith.cmpf ogt, %54, %55 : vector<1x1xf32>
    %cst_20 = arith.constant 1.000000e+00 : f32
    %57 = vector.broadcast %cst_20 : f32 to vector<1x1xf32>
    %58 = arith.select %56, %52, %57 : vector<1x1xi1>, vector<1x1xf32>
    %cst_21 = arith.constant 0.000000e+00 : f32
    %59 = vector.broadcast %cst_21 : f32 to vector<1x1xf32>
    %60 = arith.cmpf ogt, %54, %59 : vector<1x1xf32>
    %61 = arith.divf %49, %58 : vector<1x1xf32>
    %cst_22 = arith.constant 0.000000e+00 : f32
    %62 = vector.broadcast %cst_22 : f32 to vector<1x1xf32>
    %63 = arith.select %60, %61, %62 : vector<1x1xi1>, vector<1x1xf32>
    %c0_23 = arith.constant 0 : index
    %c0_24 = arith.constant 0 : index
    %64 = vector.load %arg1[%c0_23, %c0_24] : memref<8x5xf32, #tpu.memory_space<vmem>>, vector<8x5xf32>
    %c0_25 = arith.constant 0 : index
    %c0_26 = arith.constant 0 : index
    %65 = vector.load %arg8[%c0_25, %c0_26] : memref<1x5xf32, #tpu.memory_space<vmem>>, vector<1x5xf32>
    %66 = tpu.iota {dimensions = array<i32: 1>} : vector<8x5xi32>
    %67 = vector.broadcast %15 : vector<8x1xi32> to vector<8x5xi32>
    %68 = arith.cmpi eq, %66, %67 : vector<8x5xi32>
    %69 = arith.extui %68 : vector<8x5xi1> to vector<8x5xi32>
    %70 = arith.sitofp %69 : vector<8x5xi32> to vector<8x5xf32>
    %71 = arith.mulf %64, %70 : vector<8x5xf32>
    %cst_27 = arith.constant dense<0.000000e+00> : vector<8xf32>
    %72 = vector.multi_reduction <add>, %71, %cst_27 [1] : vector<8x5xf32> to vector<8xf32>
    %73 = vector.shape_cast %72 : vector<8xf32> to vector<8x1xf32>
    %cst_28 = arith.constant dense<0xFF800000> : vector<8xf32>
    %74 = vector.multi_reduction <maximumf>, %64, %cst_28 [1] : vector<8x5xf32> to vector<8xf32>
    %75 = vector.shape_cast %74 : vector<8xf32> to vector<8x1xf32>
    %76 = vector.broadcast %75 : vector<8x1xf32> to vector<8x5xf32>
    %77 = arith.subf %64, %76 : vector<8x5xf32>
    %78 = math.exp %77 : vector<8x5xf32>
    %cst_29 = arith.constant dense<0.000000e+00> : vector<8xf32>
    %79 = vector.multi_reduction <add>, %78, %cst_29 [1] : vector<8x5xf32> to vector<8xf32>
    %80 = vector.shape_cast %79 : vector<8xf32> to vector<8x1xf32>
    %81 = math.log %80 : vector<8x1xf32>
    %82 = arith.addf %75, %81 : vector<8x1xf32>
    %83 = arith.subf %82, %73 : vector<8x1xf32>
    %84 = vector.broadcast %65 : vector<1x5xf32> to vector<8x5xf32>
    %85 = arith.mulf %84, %70 : vector<8x5xf32>
    %cst_30 = arith.constant dense<0.000000e+00> : vector<8xf32>
    %86 = vector.multi_reduction <add>, %85, %cst_30 [1] : vector<8x5xf32> to vector<8xf32>
    %87 = vector.shape_cast %86 : vector<8xf32> to vector<8x1xf32>
    %88 = arith.mulf %7, %87 : vector<8x1xf32>
    %89 = arith.mulf %88, %83 : vector<8x1xf32>
    %cst_31 = arith.constant dense<0.000000e+00> : vector<1xf32>
    %90 = vector.multi_reduction <add>, %89, %cst_31 [0] : vector<8x1xf32> to vector<1xf32>
    %91 = vector.shape_cast %90 : vector<1xf32> to vector<1x1xf32>
    %92 = arith.mulf %7, %87 : vector<8x1xf32>
    %cst_32 = arith.constant dense<0.000000e+00> : vector<1xf32>
    %93 = vector.multi_reduction <add>, %92, %cst_32 [0] : vector<8x1xf32> to vector<1xf32>
    %94 = vector.shape_cast %93 : vector<1xf32> to vector<1x1xf32>
    %cst_33 = arith.constant dense<0.000000e+00> : vector<1xf32>
    %95 = vector.multi_reduction <add>, %7, %cst_33 [0] : vector<8x1xf32> to vector<1xf32>
    %96 = vector.shape_cast %95 : vector<1xf32> to vector<1x1xf32>
    %cst_34 = arith.constant 0.000000e+00 : f32
    %97 = vector.broadcast %cst_34 : f32 to vector<1x1xf32>
    %98 = arith.cmpf ogt, %96, %97 : vector<1x1xf32>
    %cst_35 = arith.constant 1.000000e+00 : f32
    %99 = vector.broadcast %cst_35 : f32 to vector<1x1xf32>
    %100 = arith.select %98, %94, %99 : vector<1x1xi1>, vector<1x1xf32>
    %cst_36 = arith.constant 0.000000e+00 : f32
    %101 = vector.broadcast %cst_36 : f32 to vector<1x1xf32>
    %102 = arith.cmpf ogt, %96, %101 : vector<1x1xf32>
    %103 = arith.divf %91, %100 : vector<1x1xf32>
    %cst_37 = arith.constant 0.000000e+00 : f32
    %104 = vector.broadcast %cst_37 : f32 to vector<1x1xf32>
    %105 = arith.select %102, %103, %104 : vector<1x1xi1>, vector<1x1xf32>
    %c0_38 = arith.constant 0 : index
    %c0_39 = arith.constant 0 : index
    %106 = vector.load %arg2[%c0_38, %c0_39] : memref<8x5xf32, #tpu.memory_space<vmem>>, vector<8x5xf32>
    %c0_40 = arith.constant 0 : index
    %c0_41 = arith.constant 0 : index
    %107 = vector.load %arg9[%c0_40, %c0_41] : memref<1x5xf32, #tpu.memory_space<vmem>>, vector<1x5xf32>
    %108 = tpu.iota {dimensions = array<i32: 1>} : vector<8x5xi32>
    %109 = vector.broadcast %21 : vector<8x1xi32> to vector<8x5xi32>
    %110 = arith.cmpi eq, %108, %109 : vector<8x5xi32>
    %111 = arith.extui %110 : vector<8x5xi1> to vector<8x5xi32>
    %112 = arith.sitofp %111 : vector<8x5xi32> to vector<8x5xf32>
    %113 = arith.mulf %106, %112 : vector<8x5xf32>
    %cst_42 = arith.constant dense<0.000000e+00> : vector<8xf32>
    %114 = vector.multi_reduction <add>, %113, %cst_42 [1] : vector<8x5xf32> to vector<8xf32>
    %115 = vector.shape_cast %114 : vector<8xf32> to vector<8x1xf32>
    %cst_43 = arith.constant dense<0xFF800000> : vector<8xf32>
    %116 = vector.multi_reduction <maximumf>, %106, %cst_43 [1] : vector<8x5xf32> to vector<8xf32>
    %117 = vector.shape_cast %116 : vector<8xf32> to vector<8x1xf32>
    %118 = vector.broadcast %117 : vector<8x1xf32> to vector<8x5xf32>
    %119 = arith.subf %106, %118 : vector<8x5xf32>
    %120 = math.exp %119 : vector<8x5xf32>
    %cst_44 = arith.constant dense<0.000000e+00> : vector<8xf32>
    %121 = vector.multi_reduction <add>, %120, %cst_44 [1] : vector<8x5xf32> to vector<8xf32>
    %122 = vector.shape_cast %121 : vector<8xf32> to vector<8x1xf32>
    %123 = math.log %122 : vector<8x1xf32>
    %124 = arith.addf %117, %123 : vector<8x1xf32>
    %125 = arith.subf %124, %115 : vector<8x1xf32>
    %126 = vector.broadcast %107 : vector<1x5xf32> to vector<8x5xf32>
    %127 = arith.mulf %126, %112 : vector<8x5xf32>
    %cst_45 = arith.constant dense<0.000000e+00> : vector<8xf32>
    %128 = vector.multi_reduction <add>, %127, %cst_45 [1] : vector<8x5xf32> to vector<8xf32>
    %129 = vector.shape_cast %128 : vector<8xf32> to vector<8x1xf32>
    %130 = arith.mulf %11, %129 : vector<8x1xf32>
    %131 = arith.mulf %130, %125 : vector<8x1xf32>
    %cst_46 = arith.constant dense<0.000000e+00> : vector<1xf32>
    %132 = vector.multi_reduction <add>, %131, %cst_46 [0] : vector<8x1xf32> to vector<1xf32>
    %133 = vector.shape_cast %132 : vector<1xf32> to vector<1x1xf32>
    %134 = arith.mulf %11, %129 : vector<8x1xf32>
    %cst_47 = arith.constant dense<0.000000e+00> : vector<1xf32>
    %135 = vector.multi_reduction <add>, %134, %cst_47 [0] : vector<8x1xf32> to vector<1xf32>
    %136 = vector.shape_cast %135 : vector<1xf32> to vector<1x1xf32>
    %cst_48 = arith.constant dense<0.000000e+00> : vector<1xf32>
    %137 = vector.multi_reduction <add>, %11, %cst_48 [0] : vector<8x1xf32> to vector<1xf32>
    %138 = vector.shape_cast %137 : vector<1xf32> to vector<1x1xf32>
    %cst_49 = arith.constant 0.000000e+00 : f32
    %139 = vector.broadcast %cst_49 : f32 to vector<1x1xf32>
    %140 = arith.cmpf ogt, %138, %139 : vector<1x1xf32>
    %cst_50 = arith.constant 1.000000e+00 : f32
    %141 = vector.broadcast %cst_50 : f32 to vector<1x1xf32>
    %142 = arith.select %140, %136, %141 : vector<1x1xi1>, vector<1x1xf32>
    %cst_51 = arith.constant 0.000000e+00 : f32
    %143 = vector.broadcast %cst_51 : f32 to vector<1x1xf32>
    %144 = arith.cmpf ogt, %138, %143 : vector<1x1xf32>
    %145 = arith.divf %133, %142 : vector<1x1xf32>
    %cst_52 = arith.constant 0.000000e+00 : f32
    %146 = vector.broadcast %cst_52 : f32 to vector<1x1xf32>
    %147 = arith.select %144, %145, %146 : vector<1x1xi1>, vector<1x1xf32>
    %c0_53 = arith.constant 0 : index
    %c0_54 = arith.constant 0 : index
    %148 = vector.load %arg3[%c0_53, %c0_54] : memref<8x4xf32, #tpu.memory_space<vmem>>, vector<8x4xf32>
    %c0_55 = arith.constant 0 : index
    %c0_56 = arith.constant 0 : index
    %149 = vector.load %arg10[%c0_55, %c0_56] : memref<1x4xf32, #tpu.memory_space<vmem>>, vector<1x4xf32>
    %150 = tpu.iota {dimensions = array<i32: 1>} : vector<8x4xi32>
    %151 = vector.broadcast %2 : vector<8x1xi32> to vector<8x4xi32>
    %152 = arith.cmpi eq, %150, %151 : vector<8x4xi32>
    %153 = arith.extui %152 : vector<8x4xi1> to vector<8x4xi32>
    %154 = arith.sitofp %153 : vector<8x4xi32> to vector<8x4xf32>
    %155 = arith.mulf %148, %154 : vector<8x4xf32>
    %cst_57 = arith.constant dense<0.000000e+00> : vector<8xf32>
    %156 = vector.multi_reduction <add>, %155, %cst_57 [1] : vector<8x4xf32> to vector<8xf32>
    %157 = vector.shape_cast %156 : vector<8xf32> to vector<8x1xf32>
    %cst_58 = arith.constant dense<0xFF800000> : vector<8xf32>
    %158 = vector.multi_reduction <maximumf>, %148, %cst_58 [1] : vector<8x4xf32> to vector<8xf32>
    %159 = vector.shape_cast %158 : vector<8xf32> to vector<8x1xf32>
    %160 = vector.broadcast %159 : vector<8x1xf32> to vector<8x4xf32>
    %161 = arith.subf %148, %160 : vector<8x4xf32>
    %162 = math.exp %161 : vector<8x4xf32>
    %cst_59 = arith.constant dense<0.000000e+00> : vector<8xf32>
    %163 = vector.multi_reduction <add>, %162, %cst_59 [1] : vector<8x4xf32> to vector<8xf32>
    %164 = vector.shape_cast %163 : vector<8xf32> to vector<8x1xf32>
    %165 = math.log %164 : vector<8x1xf32>
    %166 = arith.addf %159, %165 : vector<8x1xf32>
    %167 = arith.subf %166, %157 : vector<8x1xf32>
    %168 = vector.broadcast %149 : vector<1x4xf32> to vector<8x4xf32>
    %169 = arith.mulf %168, %154 : vector<8x4xf32>
    %cst_60 = arith.constant dense<0.000000e+00> : vector<8xf32>
    %170 = vector.multi_reduction <add>, %169, %cst_60 [1] : vector<8x4xf32> to vector<8xf32>
    %171 = vector.shape_cast %170 : vector<8xf32> to vector<8x1xf32>
    %172 = arith.mulf %3, %171 : vector<8x1xf32>
    %173 = arith.mulf %172, %167 : vector<8x1xf32>
    %cst_61 = arith.constant dense<0.000000e+00> : vector<1xf32>
    %174 = vector.multi_reduction <add>, %173, %cst_61 [0] : vector<8x1xf32> to vector<1xf32>
    %175 = vector.shape_cast %174 : vector<1xf32> to vector<1x1xf32>
    %176 = arith.mulf %3, %171 : vector<8x1xf32>
    %cst_62 = arith.constant dense<0.000000e+00> : vector<1xf32>
    %177 = vector.multi_reduction <add>, %176, %cst_62 [0] : vector<8x1xf32> to vector<1xf32>
    %178 = vector.shape_cast %177 : vector<1xf32> to vector<1x1xf32>
    %cst_63 = arith.constant dense<0.000000e+00> : vector<1xf32>
    %179 = vector.multi_reduction <add>, %3, %cst_63 [0] : vector<8x1xf32> to vector<1xf32>
    %180 = vector.shape_cast %179 : vector<1xf32> to vector<1x1xf32>
    %cst_64 = arith.constant 0.000000e+00 : f32
    %181 = vector.broadcast %cst_64 : f32 to vector<1x1xf32>
    %182 = arith.cmpf ogt, %180, %181 : vector<1x1xf32>
    %cst_65 = arith.constant 1.000000e+00 : f32
    %183 = vector.broadcast %cst_65 : f32 to vector<1x1xf32>
    %184 = arith.select %182, %178, %183 : vector<1x1xi1>, vector<1x1xf32>
    %cst_66 = arith.constant 0.000000e+00 : f32
    %185 = vector.broadcast %cst_66 : f32 to vector<1x1xf32>
    %186 = arith.cmpf ogt, %180, %185 : vector<1x1xf32>
    %187 = arith.divf %175, %184 : vector<1x1xf32>
    %cst_67 = arith.constant 0.000000e+00 : f32
    %188 = vector.broadcast %cst_67 : f32 to vector<1x1xf32>
    %189 = arith.select %186, %187, %188 : vector<1x1xi1>, vector<1x1xf32>
    %190 = arith.addf %105, %147 : vector<1x1xf32>
    %cst_68 = arith.constant 5.000000e-01 : f32
    %191 = vector.broadcast %cst_68 : f32 to vector<1x1xf32>
    %192 = arith.mulf %191, %190 : vector<1x1xf32>
    %193 = arith.addf %63, %192 : vector<1x1xf32>
    %194 = arith.addf %193, %189 : vector<1x1xf32>
    %c0_69 = arith.constant 0 : index
    %c0_70 = arith.constant 0 : index
    %195 = vector.load %arg11[%c0_69, %c0_70] : memref<1x1xf32, #tpu.memory_space<vmem>>, vector<1x1xf32>
    tpu.vector_store %arg11[%c0_69, %c0_70], %194 {strides = array<i32>} : memref<1x1xf32, #tpu.memory_space<vmem>>, vector<1x1xf32>,
    return
  }
}

</mosaic_0001>

<llo_original>
// kernel: run.1
$region0: #{run.1}
  #allocation0 [shape = 'u32[]', space=smem, size = 0x4, offset = 0x4, fixed_abs, tag = 'smem constant byte address 0x4 - core index']
  #allocation1 [shape = 'u32[144,128]{1,0:T(1,128)}', space=vmem, size = 0x12000, scoped, tag = 'internal scratch']
  %s0 = inlined_call_operand.vmem [shape: f32[8,2], index: 0, kind: input, shape index: {}]
  %s1 = inlined_call_operand.vmem [shape: f32[8,5], index: 1, kind: input, shape index: {}]
  %s2 = inlined_call_operand.vmem [shape: f32[8,5], index: 2, kind: input, shape index: {}]
  %s3 = inlined_call_operand.vmem [shape: f32[8,4], index: 3, kind: input, shape index: {}]
  %s4 = inlined_call_operand.vmem [shape: s32[8,1], index: 4, kind: input, shape index: {}]
  %s5 = inlined_call_operand.vmem [shape: s32[8,1], index: 5, kind: input, shape index: {}]
  %s6 = inlined_call_operand.vmem [shape: s32[8,1], index: 6, kind: input, shape index: {}]
  %s7 = inlined_call_operand.vmem [shape: f32[1,2], index: 7, kind: input, shape index: {}]
  %s8 = inlined_call_operand.vmem [shape: f32[1,5], index: 8, kind: input, shape index: {}]
  %s9 = inlined_call_operand.vmem [shape: f32[1,5], index: 9, kind: input, shape index: {}]
  %s10 = inlined_call_operand.vmem [shape: f32[1,4], index: 10, kind: input, shape index: {}]
  %s11 = inlined_call_operand.hbm [shape: f32[1,1], index: 11, kind: output, shape index: {}]
  %s12 = sld [smem:[#allocation0]]
  $region54: #{run.1} parent=0
    _
  %s14 = ssub.s32 1, %s12
  %s15 = scalar_select 0, %s14, %s12
  $region1: #{run.1} parent=0
    #allocation2 [shape = 'u8[512]{0}', space=vmem, size = 0x400, scoped, tag = 'output window, operand 0, single buffered']
    #allocation3 [shape = 's32[1]{0}', space=sflag, size = 0x4, scoped, tag = 'scoped memory for run.1']
    %16 = vsyncpa [#allocation3], 0
    // Predicated region
    $region2: #{run.1} parent=1 // pred_check
      _
    $region3: #{run.1} parent=1 // pred_check_branch
      %18 = sbr.rel (0) target = $region5
    $region4: #{run.1} parent=1 // pred_region
      _
    $region5: #{run.1} parent=1 // pred_fallthru
      _
    // Predicated region
    $region6: #{run.1} parent=1 // pred_check
      _
    $region7: #{run.1} parent=1 // pred_check_branch
      %20 = sbr.rel (0) target = $region9
    $region8: #{run.1} parent=1 // pred_region
      _
    $region9: #{run.1} parent=1 // pred_fallthru
      _
    // Predicated region
    $region10: #{run.1} parent=1 // pred_check
      _
    $region11: #{run.1} parent=1 // pred_check_branch
      %22 = sbr.rel (0) target = $region13
    $region12: #{run.1} parent=1 // pred_region
      _
    $region13: #{run.1} parent=1 // pred_fallthru
      _
    // Predicated region
    $region14: #{run.1} parent=1 // pred_check
      _
    $region15: #{run.1} parent=1 // pred_check_branch
      %24 = sbr.rel (0) target = $region17
    $region16: #{run.1} parent=1 // pred_region
      _
    $region17: #{run.1} parent=1 // pred_fallthru
      _
    // Predicated region
    $region18: #{run.1} parent=1 // pred_check
      _
    $region19: #{run.1} parent=1 // pred_check_branch
      %26 = sbr.rel (0) target = $region21
    $region20: #{run.1} parent=1 // pred_region
      _
    $region21: #{run.1} parent=1 // pred_fallthru
      _
    // Predicated region
    $region22: #{run.1} parent=1 // pred_check
      _
    $region23: #{run.1} parent=1 // pred_check_branch
      %28 = sbr.rel (0) target = $region25
    $region24: #{run.1} parent=1 // pred_region
      _
    $region25: #{run.1} parent=1 // pred_fallthru
      _
    // Predicated region
    $region26: #{run.1} parent=1 // pred_check
      _
    $region27: #{run.1} parent=1 // pred_check_branch
      %30 = sbr.rel (0) target = $region29
    $region28: #{run.1} parent=1 // pred_region
      _
    $region29: #{run.1} parent=1 // pred_fallthru
      _
    // Predicated region
    $region30: #{run.1} parent=1 // pred_check
      _
    $region31: #{run.1} parent=1 // pred_check_branch
      %32 = sbr.rel (0) target = $region33
    $region32: #{run.1} parent=1 // pred_region
      _
    $region33: #{run.1} parent=1 // pred_fallthru
      _
    // Predicated region
    $region34: #{run.1} parent=1 // pred_check
      _
    $region35: #{run.1} parent=1 // pred_check_branch
      %34 = sbr.rel (0) target = $region37
    $region36: #{run.1} parent=1 // pred_region
      _
    $region37: #{run.1} parent=1 // pred_fallthru
      _
    // Predicated region
    $region38: #{run.1} parent=1 // pred_check
      _
    $region39: #{run.1} parent=1 // pred_check_branch
      %36 = sbr.rel (0) target = $region41
    $region40: #{run.1} parent=1 // pred_region
      _
    $region41: #{run.1} parent=1 // pred_fallthru
      _
    // Predicated region
    $region42: #{run.1} parent=1 // pred_check
      _
    $region43: #{run.1} parent=1 // pred_check_branch
      %38 = sbr.rel (0) target = $region45
    $region44: #{run.1} parent=1 // pred_region
      _
    $region45: #{run.1} parent=1 // pred_fallthru
      _
    %v39 = vld [vmem:[%s4] sm:$0xff]
    %v40 = vld [vmem:[%s5] sm:$0xff]
    %v41 = vld [vmem:[%s6] sm:$0xff]
    %vm42 = vcmp.eq.s32.totalorder %v39, 0
    %v43 = vsel %vm42, 1, 0
    %v44 = vcvt.s32.f32 %v43
    %vm45 = vcmp.eq.s32.totalorder %v39, 1
    %v46 = vsel %vm45, 1, 0
    %v47 = vcvt.s32.f32 %v46
    %vm48 = vcmp.gt.s32.totalorder %v40, 0
    %v49 = vsel %vm48, %v40, 0
    %vm50 = vcmp.lt.s32.totalorder %v49, 4
    %v51 = vsel %vm50, %v49, 4
    %v52 = vsub.s32 %v40, 5
    %vm53 = vcmp.gt.s32.totalorder %v52, 0
    %v54 = vsel %vm53, %v52, 0
    %vm55 = vcmp.lt.s32.totalorder %v54, 4
    %v56 = vsel %vm55, %v54, 4
    %v57 = vld [vmem:[%s0] sm:$0xff]
    %v58 = vld [vmem:[%s7] sm:$0x1]
    %v59 = vlaneseq
    %v60 = vand.u32 %v59, 127
    %61 = vset.pattern.permute.xlu0 0
    %62 = vperm.xlu0 %61, %v39
    %v63 = vpop.permute.xlu0 %62
    %vm64 = vcmp.eq.s32.totalorder %v60, %v63
    %v65 = vsel %vm64, 1, 0
    %v66 = vcvt.s32.f32 %v65
    %v67 = vmul.f32 %v57, %v66
    %vm68 = vcmask 15360
    %v69 = vsel %vm68, %v67, 0.0
    %70 = vadd.xlane.f32.xlu0 %v69
    %v71 = vpop.xlane.xlu0 %70
    %v72 = vsel %vm68, %v57, -inf
    %73 = vmax.xlane.f32.xlu0 %v72
    %v74 = vpop.xlane.xlu0 %73
    %v75 = vsub.f32 %v57, %v74
    %v76 = vmul.f32 %v75, 1.442695
    %v77 = vpow.pop %v76
    %v78 = vsel %vm68, %v77, 0.0
    %79 = vadd.xlane.f32.xlu0 %v78
    %v80 = vpop.xlane.xlu0 %79
    %v81 = vlog2.pop %v80
    %v82 = vmul.f32 %v81, 0.6931472
    %v83 = vadd.f32 %v74, %v82
    %v84 = vsub.f32 %v83, %v71
    %v86 = vlaneseq
    %v87 = vshrl.u32 %v86, 7
    %v88 = vsub.s32 0, %v87
    %v89 = vrot.slane %v58, %v88
    %v91 = vmul.f32 %v89, %v66
    %v92 = vsel %vm68, %v91, 0.0
    %93 = vadd.xlane.f32.xlu0 %v92
    %v94 = vpop.xlane.xlu0 %93
    %v95 = vmul.f32 %v94, %v84
    %v96 = vrot.slane %v95, 4
    %v97 = vadd.f32 %v95, %v96
    %v98 = vrot.slane %v97, 2
    %v99 = vadd.f32 %v97, %v98
    %v100 = vrot.slane %v99, 1
    %v101 = vadd.f32 %v99, %v100
    %v102 = vrot.slane %v94, 4
    %v103 = vadd.f32 %v94, %v102
    %v104 = vrot.slane %v103, 2
    %v105 = vadd.f32 %v103, %v104
    %v106 = vrot.slane %v105, 1
    %v107 = vadd.f32 %v105, %v106
    %vm108 = vcmp.gt.f32.partialorder 8.0, 0.0
    %v109 = vsel %vm108, %v107, 1.0
    %v110 = vrcp.pop %v109
    %v111 = vmul.f32 %v101, %v110
    %v112 = vsel %vm108, %v111, 0.0
    %v113 = vld [vmem:[%s1] sm:$0xff]
    %v114 = vld [vmem:[%s8] sm:$0x1]
    %115 = vset.pattern.permute.xlu0 0
    %116 = vperm.xlu0 %115, %v51
    %v117 = vpop.permute.xlu0 %116
    %vm118 = vcmp.eq.s32.totalorder %v60, %v117
    %v119 = vsel %vm118, 1, 0
    %v120 = vcvt.s32.f32 %v119
    %v121 = vmul.f32 %v113, %v120
    %vm122 = vcmask 39936
    %v123 = vsel %vm122, %v121, 0.0
    %124 = vadd.xlane.f32.xlu0 %v123
    %v125 = vpop.xlane.xlu0 %124
    %v126 = vsel %vm122, %v113, -inf
    %127 = vmax.xlane.f32.xlu0 %v126
    %v128 = vpop.xlane.xlu0 %127
    %v129 = vsub.f32 %v113, %v128
    %v130 = vmul.f32 %v129, 1.442695
    %v131 = vpow.pop %v130
    %v132 = vsel %vm122, %v131, 0.0
    %133 = vadd.xlane.f32.xlu0 %v132
    %v134 = vpop.xlane.xlu0 %133
    %v135 = vlog2.pop %v134
    %v136 = vmul.f32 %v135, 0.6931472
    %v137 = vadd.f32 %v128, %v136
    %v138 = vsub.f32 %v137, %v125
    %v140 = vlaneseq
    %v141 = vshrl.u32 %v140, 7
    %v142 = vsub.s32 0, %v141
    %v143 = vrot.slane %v114, %v142
    %v145 = vmul.f32 %v143, %v120
    %v146 = vsel %vm122, %v145, 0.0
    %147 = vadd.xlane.f32.xlu0 %v146
    %v148 = vpop.xlane.xlu0 %147
    %v149 = vmul.f32 %v44, %v148
    %v150 = vmul.f32 %v149, %v138
    %vm151 = vcmask 7168
    %v152 = vsel %vm151, %v150, 0.0
    %v153 = vrot.slane %v152, 4
    %v154 = vadd.f32 %v152, %v153
    %v155 = vrot.slane %v154, 2
    %v156 = vadd.f32 %v154, %v155
    %v157 = vrot.slane %v156, 1
    %v158 = vadd.f32 %v156, %v157
    %v159 = vsel %vm151, %v149, 0.0
    %v160 = vrot.slane %v159, 4
    %v161 = vadd.f32 %v159, %v160
    %v162 = vrot.slane %v161, 2
    %v163 = vadd.f32 %v161, %v162
    %v164 = vrot.slane %v163, 1
    %v165 = vadd.f32 %v163, %v164
    %v166 = vsel %vm151, %v44, 0.0
    %v167 = vrot.slane %v166, 4
    %v168 = vadd.f32 %v166, %v167
    %v169 = vrot.slane %v168, 2
    %v170 = vadd.f32 %v168, %v169
    %v171 = vrot.slane %v170, 1
    %v172 = vadd.f32 %v170, %v171
    %vm173 = vcmp.gt.f32.partialorder %v172, 0.0
    %v174 = vsel %vm173, %v165, 1.0
    %v175 = vrcp.pop %v174
    %v176 = vmul.f32 %v158, %v175
    %v177 = vsel %vm173, %v176, 0.0
    %v178 = vld [vmem:[%s2] sm:$0xff]
    %v179 = vld [vmem:[%s9] sm:$0x1]
    %180 = vset.pattern.permute.xlu0 0
    %181 = vperm.xlu0 %180, %v56
    %v182 = vpop.permute.xlu0 %181
    %vm183 = vcmp.eq.s32.totalorder %v60, %v182
    %v184 = vsel %vm183, 1, 0
    %v185 = vcvt.s32.f32 %v184
    %v186 = vmul.f32 %v178, %v185
    %v187 = vsel %vm122, %v186, 0.0
    %188 = vadd.xlane.f32.xlu0 %v187
    %v189 = vpop.xlane.xlu0 %188
    %v190 = vsel %vm122, %v178, -inf
    %191 = vmax.xlane.f32.xlu0 %v190
    %v192 = vpop.xlane.xlu0 %191
    %v193 = vsub.f32 %v178, %v192
    %v194 = vmul.f32 %v193, 1.442695
    %v195 = vpow.pop %v194
    %v196 = vsel %vm122, %v195, 0.0
    %197 = vadd.xlane.f32.xlu0 %v196
    %v198 = vpop.xlane.xlu0 %197
    %v199 = vlog2.pop %v198
    %v200 = vmul.f32 %v199, 0.6931472
    %v201 = vadd.f32 %v192, %v200
    %v202 = vsub.f32 %v201, %v189
    %v204 = vlaneseq
    %v205 = vshrl.u32 %v204, 7
    %v206 = vsub.s32 0, %v205
    %v207 = vrot.slane %v179, %v206
    %v209 = vmul.f32 %v207, %v185
    %v210 = vsel %vm122, %v209, 0.0
    %211 = vadd.xlane.f32.xlu0 %v210
    %v212 = vpop.xlane.xlu0 %211
    %v213 = vmul.f32 %v47, %v212
    %v214 = vmul.f32 %v213, %v202
    %v215 = vsel %vm151, %v214, 0.0
    %v216 = vrot.slane %v215, 4
    %v217 = vadd.f32 %v215, %v216
    %v218 = vrot.slane %v217, 2
    %v219 = vadd.f32 %v217, %v218
    %v220 = vrot.slane %v219, 1
    %v221 = vadd.f32 %v219, %v220
    %v222 = vsel %vm151, %v213, 0.0
    %v223 = vrot.slane %v222, 4
    %v224 = vadd.f32 %v222, %v223
    %v225 = vrot.slane %v224, 2
    %v226 = vadd.f32 %v224, %v225
    %v227 = vrot.slane %v226, 1
    %v228 = vadd.f32 %v226, %v227
    %v229 = vsel %vm151, %v47, 0.0
    %v230 = vrot.slane %v229, 4
    %v231 = vadd.f32 %v229, %v230
    %v232 = vrot.slane %v231, 2
    %v233 = vadd.f32 %v231, %v232
    %v234 = vrot.slane %v233, 1
    %v235 = vadd.f32 %v233, %v234
    %vm236 = vcmp.gt.f32.partialorder %v235, 0.0
    %v237 = vsel %vm236, %v228, 1.0
    %v238 = vrcp.pop %v237
    %v239 = vmul.f32 %v221, %v238
    %v240 = vsel %vm236, %v239, 0.0
    %v241 = vld [vmem:[%s3] sm:$0xff]
    %v242 = vld [vmem:[%s10] sm:$0x1]
    %243 = vset.pattern.permute.xlu0 0
    %244 = vperm.xlu0 %243, %v41
    %v245 = vpop.permute.xlu0 %244
    %vm246 = vcmp.eq.s32.totalorder %v60, %v245
    %v247 = vsel %vm246, 1, 0
    %v248 = vcvt.s32.f32 %v247
    %v249 = vmul.f32 %v241, %v248
    %vm250 = vcmask 31744
    %v251 = vsel %vm250, %v249, 0.0
    %252 = vadd.xlane.f32.xlu0 %v251
    %v253 = vpop.xlane.xlu0 %252
    %v254 = vsel %vm250, %v241, -inf
    %255 = vmax.xlane.f32.xlu0 %v254
    %v256 = vpop.xlane.xlu0 %255
    %v257 = vsub.f32 %v241, %v256
    %v258 = vmul.f32 %v257, 1.442695
    %v259 = vpow.pop %v258
    %v260 = vsel %vm250, %v259, 0.0
    %261 = vadd.xlane.f32.xlu0 %v260
    %v262 = vpop.xlane.xlu0 %261
    %v263 = vlog2.pop %v262
    %v264 = vmul.f32 %v263, 0.6931472
    %v265 = vadd.f32 %v256, %v264
    %v266 = vsub.f32 %v265, %v253
    %v268 = vlaneseq
    %v269 = vshrl.u32 %v268, 7
    %v270 = vsub.s32 0, %v269
    %v271 = vrot.slane %v242, %v270
    %v273 = vmul.f32 %v271, %v248
    %v274 = vsel %vm250, %v273, 0.0
    %275 = vadd.xlane.f32.xlu0 %v274
    %v276 = vpop.xlane.xlu0 %275
    %v277 = vmul.f32 %v276, %v266
    %v278 = vrot.slane %v277, 4
    %v279 = vadd.f32 %v277, %v278
    %v280 = vrot.slane %v279, 2
    %v281 = vadd.f32 %v279, %v280
    %v282 = vrot.slane %v281, 1
    %v283 = vadd.f32 %v281, %v282
    %v284 = vrot.slane %v276, 4
    %v285 = vadd.f32 %v276, %v284
    %v286 = vrot.slane %v285, 2
    %v287 = vadd.f32 %v285, %v286
    %v288 = vrot.slane %v287, 1
    %v289 = vadd.f32 %v287, %v288
    %v290 = vsel %vm108, %v289, 1.0
    %v291 = vrcp.pop %v290
    %v292 = vmul.f32 %v283, %v291
    %v293 = vsel %vm108, %v292, 0.0
    %v294 = vadd.f32 %v177, %v240
    %v295 = vmul.f32 %v294, 0.5
    %v296 = vadd.f32 %v112, %v295
    %v297 = vadd.f32 %v296, %v293
    %vm298 = vcmask 0
    %299 = vst.msk [vmem:[#allocation2] sm:$0x1] %vm298, %v297
    // Predicated region
    $region46: #{run.1} parent=1 // pred_check
      _
    $region47: #{run.1} parent=1 // pred_check_branch
      %301 = sbr.rel (0) target = $region49
    $region48: #{run.1} parent=1 // pred_region
      %s303 = ssub.s32 16, 16
      %304 = vsyncadd [#allocation3], %s303
      %s306 = sshll.u32 [#allocation2], 4
      %s307 = int_to_ptr.vmem [resolvable:$true] %s306
      %309 = dma.vmem_to_hbm [thread:$0]  %s307, 16, %s11, [#allocation3]
    $region49: #{run.1} parent=1 // pred_fallthru
      _
    // Predicated region
    $region50: #{run.1} parent=1 // pred_check
      _
    $region51: #{run.1} parent=1 // pred_check_branch
      %311 = sbr.rel (0) target = $region53
    $region52: #{run.1} parent=1 // pred_region
      %312 = dma.done [#allocation3], 16
    $region53: #{run.1} parent=1 // pred_fallthru
      _
    %313 = vsyncpa [#allocation3], 1

</llo_original>
